<compile_context>
chip_gen: v5e
topology: v5e:2x2
jax: 0.10.0
libtpu: 0.0.40
codegen_flags: <defaults>
</compile_context>

<pallas_src>
import math
from functools import partial

import jax
import jax.numpy as jnp
from jax.experimental import pallas as pl
from jax.experimental.pallas import tpu as pltpu

BN_EPS = 1e-5
LANE = 128        # output channel dim padded to a multiple of this (lane-dense vst)
SUBLANE = 8


def _round_up(x, m):
    return ((x + m - 1) // m) * m


def _vmem_capacity_bytes():
    try:
        return int(pltpu.get_tpu_info().vmem_capacity_bytes)
    except Exception:
        return 64 << 20   # conservative fallback: v7x per-TensorCore VMEM


_VMEM_CAP = _vmem_capacity_bytes()
# Mem-bound kernels only approach the HBM roofline at >=512-row tiles; go to
# 1024 rows when the chip has the VMEM headroom (v5e/v6e), stay at 512 on v7x.
MAX_TM = 1024 if _VMEM_CAP >= (100 << 20) else 512


def _tile_rows(M):
    """Pick (TM, M_pad, G) so padded rows stay <8 instead of up to TM-1."""
    g = max(1, -(-M // MAX_TM))
    tm = _round_up(-(-M // g), SUBLANE)
    return tm, g * tm, g


# ----------------------------- Pallas kernels ------------------------------
def conv_kernel(x_ref, w_ref, o_ref, *, sigmoid):
    # bf16 x bf16 -> f32 accumulation on the MXU.
    y = jnp.dot(x_ref[...], w_ref[...], preferred_element_type=jnp.float32)
    # nn.LeakyReLU(True) -> negative_slope == 1.0 -> identity: nothing to do.
    if sigmoid:
        y = jax.nn.sigmoid(y)
    o_ref[...] = y.astype(o_ref.dtype)   # bf16 store: half the HBM writeback


def conv_stats_kernel(x_ref, w_ref, o_ref, sum_ref, sq_ref):
    """Conv GEMM tile + per-tile, per-channel sum / sum-of-squares partials.

    Stats are reduced in f32 from the pre-cast accumulator and written as an
    independent (8, Npad) partial block per grid step, so the M grid axis is
    "parallel" (both TensorCores on v7x); the tiny partials reduce in JAX.
    Zero-padded rows contribute 0 to both sums.
    """
    y = jnp.dot(x_ref[...], w_ref[...], preferred_element_type=jnp.float32)
    o_ref[...] = y.astype(o_ref.dtype)
    s = jnp.sum(y, axis=0, keepdims=True)
    q = jnp.sum(y * y, axis=0, keepdims=True)
    sum_ref[...] = jnp.broadcast_to(s, sum_ref.shape)
    sq_ref[...] = jnp.broadcast_to(q, sq_ref.shape)


# ------------------------------ pallas_call glue ----------------------------
def _conv_gemm(patches, w2d, tm, *, stats=False, sigmoid=False):
    """Tiled (M_pad, K) @ (K, Npad) matmul in Pallas (bf16 in, bf16 out).

    patches: (M_pad, K) bf16, M_pad a multiple of tm (tm a multiple of 8).
    w2d    : (K, Npad) bf16, Npad a multiple of 128 (lane-dense stores).
    """
    M_pad, K = patches.shape
    Npad = w2d.shape[1]
    G = M_pad // tm
    grid = (G,)

    x_spec = pl.BlockSpec((tm, K), lambda i: (i, 0))
    # TODO(synk): for large configs on v7x, single-buffer this resident weight
    # operand (pipeline_mode=pl.Buffered(1)) to halve its VMEM footprint.
    w_spec = pl.BlockSpec((K, Npad), lambda i: (0, 0))      # resident weights
    y_spec = pl.BlockSpec((tm, Npad), lambda i: (i, 0))

    flops = 2 * M_pad * K * Npad
    in_bytes = M_pad * K * 2 + K * Npad * 2
    out_bytes = M_pad * Npad * 2

    # Explicit VMEM budget: double-buffered in/out blocks + stats slabs + slack.
    need = 2 * (tm * K * 2) + 2 * (K * Npad * 2) + 2 * (tm * Npad * 2) \
        + 4 * (SUBLANE * Npad * 4)
    vmem_limit = int(min(int(0.9 * _VMEM_CAP), max(32 << 20, 2 * need)))

    params = pltpu.CompilerParams(
        dimension_semantics=("parallel",),       # 2 TCs on v7x
        vmem_limit_bytes=vmem_limit)

    if stats:
        s_spec = pl.BlockSpec((SUBLANE, Npad), lambda i: (i, 0))
        return pl.pallas_call(
            conv_stats_kernel,
            out_shape=(jax.ShapeDtypeStruct((M_pad, Npad), jnp.bfloat16),
                       jax.ShapeDtypeStruct((G * SUBLANE, Npad), jnp.float32),
                       jax.ShapeDtypeStruct((G * SUBLANE, Npad), jnp.float32)),
            grid=grid,
            in_specs=[x_spec, w_spec],
            out_specs=(y_spec, s_spec, s_spec),
            compiler_params=params,
            cost_estimate=pl.CostEstimate(
                flops=flops, transcendentals=0,
                bytes_accessed=in_bytes + out_bytes + 2 * G * SUBLANE * Npad * 4),
        )(patches, w2d)

    return pl.pallas_call(
        partial(conv_kernel, sigmoid=sigmoid),
        out_shape=jax.ShapeDtypeStruct((M_pad, Npad), jnp.bfloat16),
        grid=grid,
        in_specs=[x_spec, w_spec],
        out_specs=y_spec,
        compiler_params=params,
        cost_estimate=pl.CostEstimate(
            flops=flops,
            transcendentals=M_pad * Npad if sigmoid else 0,
            bytes_accessed=in_bytes + out_bytes),
    )(patches, w2d)


def im2col_nhwc(x, k, stride, pad):
    """Channels-last im2col glue (plain JAX), built directly in bf16.

    Returns a zero-row-padded bf16 patch matrix (M_pad, k*k*C) with the
    flattened K axis ordered (KH, KW, Cin), plus (M, Hout, Wout, TM).
    # TODO(synk): biggest remaining lever — fuse this gather into the conv
    # kernel (k*k shifted-tap GEMMs over the padded NHWC activation kept in
    # HBM via memory_space=pl.ANY) to avoid materializing the ~4x patch slab.
    """
    B, H, W, C = x.shape
    Hout = (H + 2 * pad - k) // stride + 1
    Wout = (W + 2 * pad - k) // stride + 1
    xp = jnp.pad(x.astype(jnp.bfloat16),
                 ((0, 0), (pad, pad), (pad, pad), (0, 0)))
    taps = [xp[:, kh:kh + stride * Hout:stride, kw:kw + stride * Wout:stride, :]
            for kh in range(k) for kw in range(k)]
    patches = jnp.stack(taps, axis=3)                  # (B, Ho, Wo, k*k, C) bf16
    M = B * Hout * Wout
    patches = patches.reshape(M, k * k * C)
    tm, M_pad, _ = _tile_rows(M)
    if M_pad != M:
        patches = jnp.pad(patches, ((0, M_pad - M), (0, 0)))
    return patches, M, Hout, Wout, tm


def _prep_weight(w, n_pad):
    # PyTorch layout (Cout, Cin, KH, KW) -> (KH*KW*Cin, Cout), zero-padded to a
    # lane-dense (K, Npad) slab, bf16 for the MXU (f32 accumulation in-kernel).
    cout = w.shape[0]
    w2d = jnp.transpose(w, (2, 3, 1, 0)).reshape(-1, cout)
    w2d = jnp.pad(w2d, ((0, 0), (0, n_pad - cout)))
    return w2d.astype(jnp.bfloat16)


# ------------------------------ model definition ----------------------------
def build_config(size, ndf, nc):
    """Replicates Discriminator.__init__ layer construction."""
    size = int(2 ** math.floor(math.log2(size)))
    ndf = int(2 ** math.floor(math.log2(ndf)))
    layers = [dict(cin=nc, cout=ndf, k=4, s=2, p=1, mode="plain")]
    mult = 0.5
    while mult < int(size / 16):
        mult *= 2
        imult = int(mult)
        layers.append(dict(cin=ndf * imult, cout=2 * ndf * imult,
                           k=4, s=2, p=1, mode="bn"))
    mult *= 2
    layers.append(dict(cin=int(mult) * ndf, cout=1, k=4, s=1, p=0,
                       mode="sigmoid"))
    return layers


def init_params(key, layers):
    params = []
    for cfg in layers:
        key, wkey = jax.random.split(key)
        # PyTorch Conv2d weight layout (Cout, Cin, KH, KW), bias=False.
        w = 0.05 * jax.random.normal(
            wkey, (cfg["cout"], cfg["cin"], cfg["k"], cfg["k"]), jnp.float32)
        p = {"w": w}
        if cfg["mode"] == "bn":
            p["gamma"] = jnp.ones((cfg["cout"],), jnp.float32)  # BN init
            p["beta"] = jnp.zeros((cfg["cout"],), jnp.float32)
        params.append(p)
    return params


def discriminator_forward(x_nchw, layers, params):
    """Forward pass matching the PyTorch Discriminator (training-mode BN)."""
    # Single layout change at the boundary; everything else stays NHWC.
    x = jnp.transpose(x_nchw, (0, 2, 3, 1)).astype(jnp.float32)
    B = x.shape[0]
    for cfg, p in zip(layers, params):
        k, s, pad, cout = cfg["k"], cfg["s"], cfg["p"], cfg["cout"]
        Hin, Win = x.shape[1], x.shape[2]

        if (cfg["mode"] == "sigmoid" and Hin == k and Win == k
                and s == 1 and pad == 0):
            # Final cout=1 conv collapses to a tiny (B, K) @ (K, 1) dot:
            # keep it in plain XLA instead of wasting 127 padded MXU lanes.
            w2d = jnp.transpose(p["w"], (2, 3, 1, 0)).reshape(-1, cout)
            logits = x.reshape(B, -1).astype(jnp.float32) @ w2d.astype(jnp.float32)
            x = jax.nn.sigmoid(logits).reshape(B, 1, 1, cout)
            continue

        n_pad = _round_up(cout, LANE)
        patches, M, Hout, Wout, tm = im2col_nhwc(x, k, s, pad)
        w2d = _prep_weight(p["w"], n_pad)

        if cfg["mode"] == "bn":
            y, psum, psq = _conv_gemm(patches, w2d, tm, stats=True)
            # Per-tile partials (value replicated across the 8 sublanes of
            # each tile block) -> pick row 0 of each tile, reduce in f32.
            ysum = psum[::SUBLANE, :cout].sum(axis=0)
            ysq = psq[::SUBLANE, :cout].sum(axis=0)
            mean = ysum / M
            var = jnp.maximum(ysq / M - mean * mean, 0.0)   # biased batch var
            scale = p["gamma"] * jax.lax.rsqrt(var + BN_EPS)
            shift = p["beta"] - mean * scale
            # BN affine as plain jnp: XLA fuses it into the next layer's
            # im2col pad/stack (no standalone HBM read-modify-write pass).
            act = y[:M, :cout].astype(jnp.float32) * scale + shift
        else:
            y = _conv_gemm(patches, w2d, tm, sigmoid=(cfg["mode"] == "sigmoid"))
            act = y[:M, :cout]          # stay bf16 between plain layers

        # nn.LeakyReLU(True): negative_slope == 1.0 -> identity (no-op).
        x = act.reshape(B, Hout, Wout, cout)

    # Final activation is (B, 1, 1, 1); return it in NCHW like PyTorch.
    return jnp.transpose(x, (0, 3, 1, 2))


if __name__ == "__main__":
    # Small configuration: Discriminator(size=16, ndf=16, nc=4), batch=2.
    size, ndf, nc, B = 16, 16, 4, 2
    layers = build_config(size, ndf, nc)

    key = jax.random.PRNGKey(0)
    key, xkey = jax.random.split(key)
    params = init_params(key, layers)
    x = jax.random.normal(xkey, (B, nc, size, size), jnp.float32)

    fwd = jax.jit(lambda inp: discriminator_forward(inp, layers, params))
    out = fwd(x)
    jax.block_until_ready(out)

    assert out.shape == (B, 1, 1, 1), out.shape
    assert bool(jnp.all((out >= 0.0) & (out <= 1.0)))
    print("KERNEL_OK")
</pallas_src>

<mosaic_0001>
module attributes {stable_mosaic.version = 11 : i64} {
  func.func @conv_kernel(%arg0: i32, %arg1: memref<128x64xbf16, #tpu.memory_space<vmem>>, %arg2: memref<64x128xbf16, #tpu.memory_space<vmem>>, %arg3: memref<128x128xbf16, #tpu.memory_space<vmem>>) attributes {dimension_semantics = [#tpu.dimension_semantics<parallel>], iteration_bounds = array<i64: 1>, scalar_prefetch = 0 : i64, scratch_operands = 0 : i64, tpu.core_type = #tpu.core_type<tc>, window_params = [{transform_indices = @transform_0, window_bounds = array<i64: 128, 64>}, {pipeline_mode = #tpu.pipeline_mode<synchronous>, transform_indices = @transform_1, window_bounds = array<i64: 64, 128>}, {transform_indices = @transform_2, window_bounds = array<i64: 128, 128>}]} {
    %c0 = arith.constant 0 : index
    %c0_0 = arith.constant 0 : index
    %0 = vector.load %arg1[%c0, %c0_0] : memref<128x64xbf16, #tpu.memory_space<vmem>>, vector<128x64xbf16>
    %c0_1 = arith.constant 0 : index
    %c0_2 = arith.constant 0 : index
    %1 = vector.load %arg2[%c0_1, %c0_2] : memref<64x128xbf16, #tpu.memory_space<vmem>>, vector<64x128xbf16>
    %cst = arith.constant dense<0.000000e+00> : vector<128x128xf32>
    %2 = tpu.matmul %0, %1, %cst {dimension_numbers = #tpu.dot_dimension_numbers<[1], [0], [0], [1], [0, 0, 1, 1], [], []>} : vector<128x64xbf16>, vector<64x128xbf16>, vector<128x128xf32> -> vector<128x128xf32>
    %3 = arith.truncf %2 : vector<128x128xf32> to vector<128x128xbf16>
    %c0_3 = arith.constant 0 : index
    %c0_4 = arith.constant 0 : index
    %4 = vector.load %arg3[%c0_3, %c0_4] : memref<128x128xbf16, #tpu.memory_space<vmem>>, vector<128x128xbf16>
    tpu.vector_store %arg3[%c0_3, %c0_4], %3 {strides = array<i32>} : memref<128x128xbf16, #tpu.memory_space<vmem>>, vector<128x128xbf16>,
    return
  }
  func.func @transform_0(%arg0: i32) -> (i32, i32) {
    %c0_i32 = arith.constant 0 : i32
    %c0_i32_0 = arith.constant 0 : i32
    return %arg0, %c0_i32 : i32, i32
  }
  func.func @transform_1(%arg0: i32) -> (i32, i32) {
    %c0_i32 = arith.constant 0 : i32
    %c0_i32_0 = arith.constant 0 : i32
    %c0_i32_1 = arith.constant 0 : i32
    return %c0_i32, %c0_i32_0 : i32, i32
  }
  func.func @transform_2(%arg0: i32) -> (i32, i32) {
    %c0_i32 = arith.constant 0 : i32
    %c0_i32_0 = arith.constant 0 : i32
    return %arg0, %c0_i32 : i32, i32
  }
}

module attributes {stable_mosaic.version = 11 : i64} {
  func.func @conv_stats_kernel(%arg0: i32, %arg1: memref<32x256xbf16, #tpu.memory_space<vmem>>, %arg2: memref<256x128xbf16, #tpu.memory_space<vmem>>, %arg3: memref<32x128xbf16, #tpu.memory_space<vmem>>, %arg4: memref<8x128xf32, #tpu.memory_space<vmem>>, %arg5: memref<8x128xf32, #tpu.memory_space<vmem>>) attributes {dimension_semantics = [#tpu.dimension_semantics<parallel>], iteration_bounds = array<i64: 1>, scalar_prefetch = 0 : i64, scratch_operands = 0 : i64, tpu.core_type = #tpu.core_type<tc>, window_params = [{transform_indices = @transform_0, window_bounds = array<i64: 32, 256>}, {pipeline_mode = #tpu.pipeline_mode<synchronous>, transform_indices = @transform_1, window_bounds = array<i64: 256, 128>}, {transform_indices = @transform_2, window_bounds = array<i64: 32, 128>}, {transform_indices = @transform_3, window_bounds = array<i64: 8, 128>}, {transform_indices = @transform_4, window_bounds = array<i64: 8, 128>}]} {
    %c0 = arith.constant 0 : index
    %c0_0 = arith.constant 0 : index
    %0 = vector.load %arg1[%c0, %c0_0] : memref<32x256xbf16, #tpu.memory_space<vmem>>, vector<32x256xbf16>
    %c0_1 = arith.constant 0 : index
    %c0_2 = arith.constant 0 : index
    %1 = vector.load %arg2[%c0_1, %c0_2] : memref<256x128xbf16, #tpu.memory_space<vmem>>, vector<256x128xbf16>
    %cst = arith.constant dense<0.000000e+00> : vector<32x128xf32>
    %2 = tpu.matmul %0, %1, %cst {dimension_numbers = #tpu.dot_dimension_numbers<[1], [0], [0], [1], [0, 0, 1, 1], [], []>} : vector<32x256xbf16>, vector<256x128xbf16>, vector<32x128xf32> -> vector<32x128xf32>
    %3 = arith.truncf %2 : vector<32x128xf32> to vector<32x128xbf16>
    %c0_3 = arith.constant 0 : index
    %c0_4 = arith.constant 0 : index
    %4 = vector.load %arg3[%c0_3, %c0_4] : memref<32x128xbf16, #tpu.memory_space<vmem>>, vector<32x128xbf16>
    tpu.vector_store %arg3[%c0_3, %c0_4], %3 {strides = array<i32>} : memref<32x128xbf16, #tpu.memory_space<vmem>>, vector<32x128xbf16>,
    %cst_5 = arith.constant dense<0.000000e+00> : vector<128xf32>
    %5 = vector.multi_reduction <add>, %2, %cst_5 [0] : vector<32x128xf32> to vector<128xf32>
    %6 = vector.shape_cast %5 : vector<128xf32> to vector<1x128xf32>
    %7 = arith.mulf %2, %2 : vector<32x128xf32>
    %cst_6 = arith.constant dense<0.000000e+00> : vector<128xf32>
    %8 = vector.multi_reduction <add>, %7, %cst_6 [0] : vector<32x128xf32> to vector<128xf32>
    %9 = vector.shape_cast %8 : vector<128xf32> to vector<1x128xf32>
    %10 = vector.shape_cast %6 : vector<1x128xf32> to vector<1x128xf32>
    %11 = vector.broadcast %10 : vector<1x128xf32> to vector<8x128xf32>
    %c0_7 = arith.constant 0 : index
    %c0_8 = arith.constant 0 : index
    %12 = vector.load %arg4[%c0_7, %c0_8] : memref<8x128xf32, #tpu.memory_space<vmem>>, vector<8x128xf32>
    tpu.vector_store %arg4[%c0_7, %c0_8], %11 {strides = array<i32>} : memref<8x128xf32, #tpu.memory_space<vmem>>, vector<8x128xf32>,
    %13 = vector.shape_cast %9 : vector<1x128xf32> to vector<1x128xf32>
    %14 = vector.broadcast %13 : vector<1x128xf32> to vector<8x128xf32>
    %c0_9 = arith.constant 0 : index
    %c0_10 = arith.constant 0 : index
    %15 = vector.load %arg5[%c0_9, %c0_10] : memref<8x128xf32, #tpu.memory_space<vmem>>, vector<8x128xf32>
    tpu.vector_store %arg5[%c0_9, %c0_10], %14 {strides = array<i32>} : memref<8x128xf32, #tpu.memory_space<vmem>>, vector<8x128xf32>,
    return
  }
  func.func @transform_0(%arg0: i32) -> (i32, i32) {
    %c0_i32 = arith.constant 0 : i32
    %c0_i32_0 = arith.constant 0 : i32
    return %arg0, %c0_i32 : i32, i32
  }
  func.func @transform_1(%arg0: i32) -> (i32, i32) {
    %c0_i32 = arith.constant 0 : i32
    %c0_i32_0 = arith.constant 0 : i32
    %c0_i32_1 = arith.constant 0 : i32
    return %c0_i32, %c0_i32_0 : i32, i32
  }
  func.func @transform_2(%arg0: i32) -> (i32, i32) {
    %c0_i32 = arith.constant 0 : i32
    %c0_i32_0 = arith.constant 0 : i32
    return %arg0, %c0_i32 : i32, i32
  }
  func.func @transform_3(%arg0: i32) -> (i32, i32) {
    %c0_i32 = arith.constant 0 : i32
    %c0_i32_0 = arith.constant 0 : i32
    return %arg0, %c0_i32 : i32, i32
  }
  func.func @transform_4(%arg0: i32) -> (i32, i32) {
    %c0_i32 = arith.constant 0 : i32
    %c0_i32_0 = arith.constant 0 : i32
    return %arg0, %c0_i32 : i32, i32
  }
}

</mosaic_0001>

<llo_original>
// kernel: _lambda_.2
$region0: #{_lambda_.2}
  #allocation0 [shape = 'u32[]', space=smem, size = 0x4, offset = 0x4, fixed_abs, tag = 'smem constant byte address 0x4 - core index']
  #allocation1 [shape = 'u32[72,128]{1,0:T(1,128)}', space=vmem, size = 0x9000, scoped, tag = 'internal scratch']
  %s0 = inlined_call_operand.vmem [shape: bf16[128,64], index: 0, kind: input, shape index: {}]
  %s1 = inlined_call_operand.vmem [shape: bf16[64,128], index: 1, kind: input, shape index: {}]
  %s2 = inlined_call_operand.vmem [shape: bf16[128,128], index: 2, kind: output, shape index: {}]
  %s3 = sld [smem:[#allocation0]]
  $region18: #{_lambda_.2} parent=0
    _
  %s5 = ssub.s32 1, %s3
  %s6 = scalar_select 0, %s5, %s3
  // Predicated region
  $region2: #{_lambda_.2} parent=0 // pred_check
    _
  $region3: #{_lambda_.2} parent=0 // pred_check_branch
    %8 = sbr.rel (0) target = $region5
  $region4: #{_lambda_.2} parent=0 // pred_region
    _
  $region5: #{_lambda_.2} parent=0 // pred_fallthru
    _
  // Predicated region
  $region6: #{_lambda_.2} parent=0 // pred_check
    _
  $region7: #{_lambda_.2} parent=0 // pred_check_branch
    %10 = sbr.rel (0) target = $region9
  $region8: #{_lambda_.2} parent=0 // pred_region
    _
  $region9: #{_lambda_.2} parent=0 // pred_fallthru
    _
  %v12 = vld [vmem:[%s0] sm:$0xf]
  %v13 = vld [vmem:[%s0 + $0x4] sm:$0xf]
  %v14 = vld [vmem:[%s0 + $0x8] sm:$0xf]
  %v15 = vld [vmem:[%s0 + $0xc] sm:$0xf]
  %v16 = vld [vmem:[%s0 + $0x10] sm:$0xf]
  %v17 = vld [vmem:[%s0 + $0x14] sm:$0xf]
  %v18 = vld [vmem:[%s0 + $0x18] sm:$0xf]
  %v19 = vld [vmem:[%s0 + $0x1c] sm:$0xf]
  %v20 = vld [vmem:[%s0 + $0x20] sm:$0xf]
  %v21 = vld [vmem:[%s0 + $0x24] sm:$0xf]
  %v22 = vld [vmem:[%s0 + $0x28] sm:$0xf]
  %v23 = vld [vmem:[%s0 + $0x2c] sm:$0xf]
  %v24 = vld [vmem:[%s0 + $0x30] sm:$0xf]
  %v25 = vld [vmem:[%s0 + $0x34] sm:$0xf]
  %v26 = vld [vmem:[%s0 + $0x38] sm:$0xf]
  %v27 = vld [vmem:[%s0 + $0x3c] sm:$0xf]
  %v28 = vld [vmem:[%s1] sm:$0xf]
  %v29 = vld [vmem:[%s1 + $0x4] sm:$0xf]
  %v30 = vld [vmem:[%s1 + $0x8] sm:$0xf]
  %v31 = vld [vmem:[%s1 + $0xc] sm:$0xf]
  %v32 = vld [vmem:[%s1 + $0x10] sm:$0xf]
  %v33 = vld [vmem:[%s1 + $0x14] sm:$0xf]
  %v34 = vld [vmem:[%s1 + $0x18] sm:$0xf]
  %v35 = vld [vmem:[%s1 + $0x1c] sm:$0xf]
  %v52 = vunpack.c.l.b16 %v12
  %v53 = vunpack.c.l.b16 %v13
  %v54 = vunpack.c.l.b16 %v14
  %v55 = vunpack.c.l.b16 %v15
  %v56 = vunpack.c.l.b16 %v16
  %v57 = vunpack.c.l.b16 %v17
  %v58 = vunpack.c.l.b16 %v18
  %v59 = vunpack.c.l.b16 %v19
  %v60 = vunpack.c.l.b16 %v20
  %v61 = vunpack.c.l.b16 %v21
  %v62 = vunpack.c.l.b16 %v22
  %v63 = vunpack.c.l.b16 %v23
  %v64 = vunpack.c.l.b16 %v24
  %v65 = vunpack.c.l.b16 %v25
  %v66 = vunpack.c.l.b16 %v26
  %v67 = vunpack.c.l.b16 %v27
  %v68 = vpack.c.b16 %v53, %v52
  %v69 = vpack.c.b16 %v55, %v54
  %v70 = vpack.c.b16 %v57, %v56
  %v71 = vpack.c.b16 %v59, %v58
  %v72 = vpack.c.b16 %v61, %v60
  %v73 = vpack.c.b16 %v63, %v62
  %v74 = vpack.c.b16 %v65, %v64
  %v75 = vpack.c.b16 %v67, %v66
  %v84 = vunpack.c.l.b16 %v28
  %v85 = vunpack.c.l.b16 %v29
  %v86 = vunpack.c.l.b16 %v30
  %v87 = vunpack.c.l.b16 %v31
  %v88 = vunpack.c.l.b16 %v32
  %v89 = vunpack.c.l.b16 %v33
  %v90 = vunpack.c.l.b16 %v34
  %v91 = vunpack.c.l.b16 %v35
  %v92 = vpack.c.b16 %v85, %v84
  %v93 = vpack.c.b16 %v87, %v86
  %v94 = vpack.c.b16 %v89, %v88
  %v95 = vpack.c.b16 %v91, %v90
  %vm100 = vcmask 523264
  %v102 = vsel %vm100, %v68, 0
  %v105 = vsel %vm100, %v69, 0
  %v108 = vsel %vm100, %v70, 0
  %v111 = vsel %vm100, %v71, 0
  %v114 = vsel %vm100, %v72, 0
  %v117 = vsel %vm100, %v73, 0
  %v120 = vsel %vm100, %v74, 0
  %v123 = vsel %vm100, %v75, 0
  %125 = vmatpush.bf16.msra.mxu0 0
  %126 = vmatpush.bf16.msra.mxu0 0
  %127 = vmatpush.bf16.msra.mxu0 0
  %128 = vmatpush.bf16.msra.mxu0 0
  %129 = vmatpush.bf16.msra.mxu0 %v95
  %130 = vmatpush.bf16.msra.mxu0 %v94
  %131 = vmatpush.bf16.msra.mxu0 %v93
  %132 = vmatpush.bf16.msra.mxu0 %v92
  %133 = vmatmul.bf16.gmra.mxu0 %v102
  %v134 = vpop.f32.mrf.mxu0
  %v135 = vadd.f32 0.0, %v134
  %v136 = vpop.f32.mrf.mxu0
  %v137 = vadd.f32 0.0, %v136
  %138 = vmatmul.bf16.gmra.mxu0 %v105
  %v139 = vpop.f32.mrf.mxu0
  %v140 = vadd.f32 0.0, %v139
  %v141 = vpop.f32.mrf.mxu0
  %v142 = vadd.f32 0.0, %v141
  %143 = vmatmul.bf16.gmra.mxu0 %v108
  %v144 = vpop.f32.mrf.mxu0
  %v145 = vadd.f32 0.0, %v144
  %v146 = vpop.f32.mrf.mxu0
  %v147 = vadd.f32 0.0, %v146
  %148 = vmatmul.bf16.gmra.mxu0 %v111
  %v149 = vpop.f32.mrf.mxu0
  %v150 = vadd.f32 0.0, %v149
  %v151 = vpop.f32.mrf.mxu0
  %v152 = vadd.f32 0.0, %v151
  %153 = vmatmul.bf16.gmra.mxu0 %v114
  %v154 = vpop.f32.mrf.mxu0
  %v155 = vadd.f32 0.0, %v154
  %v156 = vpop.f32.mrf.mxu0
  %v157 = vadd.f32 0.0, %v156
  %158 = vmatmul.bf16.gmra.mxu0 %v117
  %v159 = vpop.f32.mrf.mxu0
  %v160 = vadd.f32 0.0, %v159
  %v161 = vpop.f32.mrf.mxu0
  %v162 = vadd.f32 0.0, %v161
  %163 = vmatmul.bf16.gmra.mxu0 %v120
  %v164 = vpop.f32.mrf.mxu0
  %v165 = vadd.f32 0.0, %v164
  %v166 = vpop.f32.mrf.mxu0
  %v167 = vadd.f32 0.0, %v166
  %168 = vmatmul.bf16.gmra.mxu0 %v123
  %v169 = vpop.f32.mrf.mxu0
  %v170 = vadd.f32 0.0, %v169
  %v171 = vpop.f32.mrf.mxu0
  %v172 = vadd.f32 0.0, %v171
  %173 = vdwg.mxu0
  %v174 = vpack.c.bf16 %v135, %v135
  %v175 = vpack.c.bf16 %v137, %v137
  %v176 = vpack.c.bf16 %v140, %v140
  %v177 = vpack.c.bf16 %v142, %v142
  %v178 = vpack.c.bf16 %v145, %v145
  %v179 = vpack.c.bf16 %v147, %v147
  %v180 = vpack.c.bf16 %v150, %v150
  %v181 = vpack.c.bf16 %v152, %v152
  %v182 = vpack.c.bf16 %v155, %v155
  %v183 = vpack.c.bf16 %v157, %v157
  %v184 = vpack.c.bf16 %v160, %v160
  %v185 = vpack.c.bf16 %v162, %v162
  %v186 = vpack.c.bf16 %v165, %v165
  %v187 = vpack.c.bf16 %v167, %v167
  %v188 = vpack.c.bf16 %v170, %v170
  %v189 = vpack.c.bf16 %v172, %v172
  %190 = vst [vmem:[%s2] sm:$0xf] %v174
  %191 = vst [vmem:[%s2 + $0x4] sm:$0xf] %v175
  %192 = vst [vmem:[%s2 + $0x8] sm:$0xf] %v176
  %193 = vst [vmem:[%s2 + $0xc] sm:$0xf] %v177
  %194 = vst [vmem:[%s2 + $0x10] sm:$0xf] %v178
  %195 = vst [vmem:[%s2 + $0x14] sm:$0xf] %v179
  %196 = vst [vmem:[%s2 + $0x18] sm:$0xf] %v180
  %197 = vst [vmem:[%s2 + $0x1c] sm:$0xf] %v181
  %198 = vst [vmem:[%s2 + $0x20] sm:$0xf] %v182
  %199 = vst [vmem:[%s2 + $0x24] sm:$0xf] %v183
  %200 = vst [vmem:[%s2 + $0x28] sm:$0xf] %v184
  %201 = vst [vmem:[%s2 + $0x2c] sm:$0xf] %v185
  %202 = vst [vmem:[%s2 + $0x30] sm:$0xf] %v186
  %203 = vst [vmem:[%s2 + $0x34] sm:$0xf] %v187
  %204 = vst [vmem:[%s2 + $0x38] sm:$0xf] %v188
  %205 = vst [vmem:[%s2 + $0x3c] sm:$0xf] %v189
  // Predicated region
  $region10: #{_lambda_.2} parent=0 // pred_check
    _
  $region11: #{_lambda_.2} parent=0 // pred_check_branch
    %207 = sbr.rel (0) target = $region13
  $region12: #{_lambda_.2} parent=0 // pred_region
    _
  $region13: #{_lambda_.2} parent=0 // pred_fallthru
    _
  // Predicated region
  $region14: #{_lambda_.2} parent=0 // pred_check
    _
  $region15: #{_lambda_.2} parent=0 // pred_check_branch
    %209 = sbr.rel (0) target = $region17
  $region16: #{_lambda_.2} parent=0 // pred_region
    _
  $region17: #{_lambda_.2} parent=0 // pred_fallthru
    _

// kernel: _lambda_.3
$region0: #{_lambda_.3}
  #allocation0 [shape = 'u32[]', space=smem, size = 0x4, offset = 0x4, fixed_abs, tag = 'smem constant byte address 0x4 - core index']
  #allocation1 [shape = 'u32[72,128]{1,0:T(1,128)}', space=vmem, size = 0x9000, scoped, tag = 'internal scratch']
  %s0 = inlined_call_operand.vmem [shape: bf16[32,256], index: 0, kind: input, shape index: {}]
  %s1 = inlined_call_operand.vmem [shape: bf16[256,128], index: 1, kind: input, shape index: {}]
  %s2 = inlined_call_operand.vmem [shape: bf16[32,128], index: 2, kind: output, shape index: {0}]
  %s3 = inlined_call_operand.vmem [shape: f32[8,128], index: 3, kind: output, shape index: {1}]
  %s4 = inlined_call_operand.vmem [shape: f32[8,128], index: 4, kind: output, shape index: {2}]
  %5 = xla_tuple %s2, %s3, %s4
  %s6 = sld [smem:[#allocation0]]
  $region34: #{_lambda_.3} parent=0
    _
  %s8 = ssub.s32 1, %s6
  %s9 = scalar_select 0, %s8, %s6
  // Predicated region
  $region2: #{_lambda_.3} parent=0 // pred_check
    _
  $region3: #{_lambda_.3} parent=0 // pred_check_branch
    %11 = sbr.rel (0) target = $region5
  $region4: #{_lambda_.3} parent=0 // pred_region
    _
  $region5: #{_lambda_.3} parent=0 // pred_fallthru
    _
  // Predicated region
  $region6: #{_lambda_.3} parent=0 // pred_check
    _
  $region7: #{_lambda_.3} parent=0 // pred_check_branch
    %13 = sbr.rel (0) target = $region9
  $region8: #{_lambda_.3} parent=0 // pred_region
    _
  $region9: #{_lambda_.3} parent=0 // pred_fallthru
    _
  %v14 = vld [vmem:[%s0] sm:$0xff]
  %v15 = vld [vmem:[%s0 + $0x8] sm:$0xff]
  %v16 = vld [vmem:[%s0 + $0x10] sm:$0xff]
  %v17 = vld [vmem:[%s0 + $0x18] sm:$0xff]
  %v18 = vld [vmem:[%s1] sm:$0xf]
  %v19 = vld [vmem:[%s1 + $0x4] sm:$0xf]
  %v20 = vld [vmem:[%s1 + $0x8] sm:$0xf]
  %v21 = vld [vmem:[%s1 + $0xc] sm:$0xf]
  %v22 = vld [vmem:[%s1 + $0x10] sm:$0xf]
  %v23 = vld [vmem:[%s1 + $0x14] sm:$0xf]
  %v24 = vld [vmem:[%s1 + $0x18] sm:$0xf]
  %v25 = vld [vmem:[%s1 + $0x1c] sm:$0xf]
  %v26 = vld [vmem:[%s1 + $0x20] sm:$0xf]
  %v27 = vld [vmem:[%s1 + $0x24] sm:$0xf]
  %v28 = vld [vmem:[%s1 + $0x28] sm:$0xf]
  %v29 = vld [vmem:[%s1 + $0x2c] sm:$0xf]
  %v30 = vld [vmem:[%s1 + $0x30] sm:$0xf]
  %v31 = vld [vmem:[%s1 + $0x34] sm:$0xf]
  %v32 = vld [vmem:[%s1 + $0x38] sm:$0xf]
  %v33 = vld [vmem:[%s1 + $0x3c] sm:$0xf]
  %v34 = vld [vmem:[%s1 + $0x40] sm:$0xf]
  %v35 = vld [vmem:[%s1 + $0x44] sm:$0xf]
  %v36 = vld [vmem:[%s1 + $0x48] sm:$0xf]
  %v37 = vld [vmem:[%s1 + $0x4c] sm:$0xf]
  %v38 = vld [vmem:[%s1 + $0x50] sm:$0xf]
  %v39 = vld [vmem:[%s1 + $0x54] sm:$0xf]
  %v40 = vld [vmem:[%s1 + $0x58] sm:$0xf]
  %v41 = vld [vmem:[%s1 + $0x5c] sm:$0xf]
  %v42 = vld [vmem:[%s1 + $0x60] sm:$0xf]
  %v43 = vld [vmem:[%s1 + $0x64] sm:$0xf]
  %v44 = vld [vmem:[%s1 + $0x68] sm:$0xf]
  %v45 = vld [vmem:[%s1 + $0x6c] sm:$0xf]
  %v46 = vld [vmem:[%s1 + $0x70] sm:$0xf]
  %v47 = vld [vmem:[%s1 + $0x74] sm:$0xf]
  %v48 = vld [vmem:[%s1 + $0x78] sm:$0xf]
  %v49 = vld [vmem:[%s1 + $0x7c] sm:$0xf]
  %v54 = vunpack.c.l.b16 %v14
  %v55 = vunpack.c.h.b16 %v14
  %v56 = vunpack.c.l.b16 %v15
  %v57 = vunpack.c.h.b16 %v15
  %v58 = vunpack.c.l.b16 %v16
  %v59 = vunpack.c.h.b16 %v16
  %v60 = vunpack.c.l.b16 %v17
  %v61 = vunpack.c.h.b16 %v17
  %v62 = vpack.c.b16 %v56, %v54
  %v63 = vpack.c.b16 %v57, %v55
  %v64 = vpack.c.b16 %v60, %v58
  %v65 = vpack.c.b16 %v61, %v59
  %v102 = vunpack.c.l.b16 %v18
  %v103 = vunpack.c.l.b16 %v19
  %v104 = vunpack.c.l.b16 %v20
  %v105 = vunpack.c.l.b16 %v21
  %v106 = vunpack.c.l.b16 %v22
  %v107 = vunpack.c.l.b16 %v23
  %v108 = vunpack.c.l.b16 %v24
  %v109 = vunpack.c.l.b16 %v25
  %v110 = vunpack.c.l.b16 %v26
  %v111 = vunpack.c.l.b16 %v27
  %v112 = vunpack.c.l.b16 %v28
  %v113 = vunpack.c.l.b16 %v29
  %v114 = vunpack.c.l.b16 %v30
  %v115 = vunpack.c.l.b16 %v31
  %v116 = vunpack.c.l.b16 %v32
  %v117 = vunpack.c.l.b16 %v33
  %v118 = vunpack.c.l.b16 %v34
  %v119 = vunpack.c.l.b16 %v35
  %v120 = vunpack.c.l.b16 %v36
  %v121 = vunpack.c.l.b16 %v37
  %v122 = vunpack.c.l.b16 %v38
  %v123 = vunpack.c.l.b16 %v39
  %v124 = vunpack.c.l.b16 %v40
  %v125 = vunpack.c.l.b16 %v41
  %v126 = vunpack.c.l.b16 %v42
  %v127 = vunpack.c.l.b16 %v43
  %v128 = vunpack.c.l.b16 %v44
  %v129 = vunpack.c.l.b16 %v45
  %v130 = vunpack.c.l.b16 %v46
  %v131 = vunpack.c.l.b16 %v47
  %v132 = vunpack.c.l.b16 %v48
  %v133 = vunpack.c.l.b16 %v49
  %v134 = vpack.c.b16 %v103, %v102
  %v135 = vpack.c.b16 %v105, %v104
  %v136 = vpack.c.b16 %v107, %v106
  %v137 = vpack.c.b16 %v109, %v108
  %v138 = vpack.c.b16 %v111, %v110
  %v139 = vpack.c.b16 %v113, %v112
  %v140 = vpack.c.b16 %v115, %v114
  %v141 = vpack.c.b16 %v117, %v116
  %v142 = vpack.c.b16 %v119, %v118
  %v143 = vpack.c.b16 %v121, %v120
  %v144 = vpack.c.b16 %v123, %v122
  %v145 = vpack.c.b16 %v125, %v124
  %v146 = vpack.c.b16 %v127, %v126
  %v147 = vpack.c.b16 %v129, %v128
  %v148 = vpack.c.b16 %v131, %v130
  %v149 = vpack.c.b16 %v133, %v132
  %166 = vmatpush.bf16.msra.mxu0 %v141
  %167 = vmatpush.bf16.msra.mxu0 %v140
  %168 = vmatpush.bf16.msra.mxu0 %v139
  %169 = vmatpush.bf16.msra.mxu0 %v138
  %170 = vmatpush.bf16.msra.mxu0 %v137
  %171 = vmatpush.bf16.msra.mxu0 %v136
  %172 = vmatpush.bf16.msra.mxu0 %v135
  %173 = vmatpush.bf16.msra.mxu0 %v134
  %174 = vmatmul.bf16.gmra.mxu0 %v62
  %v175 = vpop.f32.mrf.mxu0
  %v176 = vadd.f32 0.0, %v175
  %v177 = vpop.f32.mrf.mxu0
  %v178 = vadd.f32 0.0, %v177
  %179 = vmatmul.bf16.gmra.mxu0 %v64
  %v180 = vpop.f32.mrf.mxu0
  %v181 = vadd.f32 0.0, %v180
  %v182 = vpop.f32.mrf.mxu0
  %v183 = vadd.f32 0.0, %v182
  %184 = vdwg.mxu0
  %185 = vmatpush.bf16.msra.mxu0 %v149
  %186 = vmatpush.bf16.msra.mxu0 %v148
  %187 = vmatpush.bf16.msra.mxu0 %v147
  %188 = vmatpush.bf16.msra.mxu0 %v146
  %189 = vmatpush.bf16.msra.mxu0 %v145
  %190 = vmatpush.bf16.msra.mxu0 %v144
  %191 = vmatpush.bf16.msra.mxu0 %v143
  %192 = vmatpush.bf16.msra.mxu0 %v142
  %193 = vmatmul.bf16.gmra.mxu0 %v63
  %v194 = vpop.f32.mrf.mxu0
  %v195 = vadd.f32 %v176, %v194
  %v196 = vpop.f32.mrf.mxu0
  %v197 = vadd.f32 %v178, %v196
  %198 = vmatmul.bf16.gmra.mxu0 %v65
  %v199 = vpop.f32.mrf.mxu0
  %v200 = vadd.f32 %v181, %v199
  %v201 = vpop.f32.mrf.mxu0
  %v202 = vadd.f32 %v183, %v201
  %203 = vdwg.mxu0
  %v204 = vpack.c.bf16 %v195, %v195
  %v205 = vpack.c.bf16 %v197, %v197
  %v206 = vpack.c.bf16 %v200, %v200
  %v207 = vpack.c.bf16 %v202, %v202
  %208 = vst [vmem:[%s2] sm:$0xf] %v204
  %209 = vst [vmem:[%s2 + $0x4] sm:$0xf] %v205
  %210 = vst [vmem:[%s2 + $0x8] sm:$0xf] %v206
  %211 = vst [vmem:[%s2 + $0xc] sm:$0xf] %v207
  %v212 = vadd.f32 %v195, %v197
  %v213 = vadd.f32 %v212, %v200
  %v214 = vadd.f32 %v213, %v202
  %v215 = vrot.slane %v214, 4
  %v216 = vadd.f32 %v214, %v215
  %v217 = vrot.slane %v216, 2
  %v218 = vadd.f32 %v216, %v217
  %v219 = vrot.slane %v218, 1
  %v220 = vadd.f32 %v218, %v219
  %v221 = vmul.f32 %v195, %v195
  %v222 = vmul.f32 %v197, %v197
  %v223 = vmul.f32 %v200, %v200
  %v224 = vmul.f32 %v202, %v202
  %v225 = vadd.f32 %v221, %v222
  %v226 = vadd.f32 %v225, %v223
  %v227 = vadd.f32 %v226, %v224
  %v228 = vrot.slane %v227, 4
  %v229 = vadd.f32 %v227, %v228
  %v230 = vrot.slane %v229, 2
  %v231 = vadd.f32 %v229, %v230
  %v232 = vrot.slane %v231, 1
  %v233 = vadd.f32 %v231, %v232
  %234 = vst [vmem:[%s3] sm:$0xff] %v220
  %235 = vst [vmem:[%s4] sm:$0xff] %v233
  // Predicated region
  $region10: #{_lambda_.3} parent=0 // pred_check
    _
  $region11: #{_lambda_.3} parent=0 // pred_check_branch
    %237 = sbr.rel (0) target = $region13
  $region12: #{_lambda_.3} parent=0 // pred_region
    _
  $region13: #{_lambda_.3} parent=0 // pred_fallthru
    _
  // Predicated region
  $region14: #{_lambda_.3} parent=0 // pred_check
    _
  $region15: #{_lambda_.3} parent=0 // pred_check_branch
    %239 = sbr.rel (0) target = $region17
  $region16: #{_lambda_.3} parent=0 // pred_region
    _
  $region17: #{_lambda_.3} parent=0 // pred_fallthru
    _
  // Predicated region
  $region18: #{_lambda_.3} parent=0 // pred_check
    _
  $region19: #{_lambda_.3} parent=0 // pred_check_branch
    %241 = sbr.rel (0) target = $region21
  $region20: #{_lambda_.3} parent=0 // pred_region
    _
  $region21: #{_lambda_.3} parent=0 // pred_fallthru
    _
  // Predicated region
  $region22: #{_lambda_.3} parent=0 // pred_check
    _
  $region23: #{_lambda_.3} parent=0 // pred_check_branch
    %243 = sbr.rel (0) target = $region25
  $region24: #{_lambda_.3} parent=0 // pred_region
    _
  $region25: #{_lambda_.3} parent=0 // pred_fallthru
    _
  // Predicated region
  $region26: #{_lambda_.3} parent=0 // pred_check
    _
  $region27: #{_lambda_.3} parent=0 // pred_check_branch
    %245 = sbr.rel (0) target = $region29
  $region28: #{_lambda_.3} parent=0 // pred_region
    _
  $region29: #{_lambda_.3} parent=0 // pred_fallthru
    _
  // Predicated region
  $region30: #{_lambda_.3} parent=0 // pred_check
    _
  $region31: #{_lambda_.3} parent=0 // pred_check_branch
    %247 = sbr.rel (0) target = $region33
  $region32: #{_lambda_.3} parent=0 // pred_region
    _
  $region33: #{_lambda_.3} parent=0 // pred_fallthru
    _

</llo_original>
